<compile_context>
chip_gen: v5e
topology: v5e:2x2
jax: 0.10.0
libtpu: 0.0.40
codegen_flags: <defaults>
</compile_context>

<pallas_src>
import jax
import jax.numpy as jnp
from jax.experimental import pallas as pl
from jax.experimental.pallas import tpu as pltpu


def _round_up(x, m):
    return ((x + m - 1) // m) * m


# --------------------------------------------------------------------------
# Kernels
# --------------------------------------------------------------------------
def _ridge_kernel_f32(x_ref, w_ref, b_ref, o_ref):
    # x_ref : (tm, tk)   input tile
    # w_ref : (tk, tn)   pre-transposed weight tile (K, N layout)
    # b_ref : (1, tn)    bias row tile
    # o_ref : (tm, tn)   f32 output tile, used directly as the K accumulator
    @pl.when(pl.program_id(2) == 0)
    def _():
        # Fold the bias into the accumulator init: no finalize pass needed.
        o_ref[...] = jnp.broadcast_to(b_ref[...], o_ref.shape).astype(o_ref.dtype)

    o_ref[...] += jnp.dot(x_ref[...], w_ref[...],
                          preferred_element_type=jnp.float32)


def _ridge_kernel_acc(x_ref, w_ref, b_ref, o_ref, acc_ref):
    # Same as above but with an f32 VMEM accumulator for narrow output dtypes.
    @pl.when(pl.program_id(2) == 0)
    def _():
        acc_ref[...] = jnp.broadcast_to(
            b_ref[...].astype(jnp.float32), acc_ref.shape)

    acc_ref[...] += jnp.dot(x_ref[...], w_ref[...],
                            preferred_element_type=jnp.float32)

    @pl.when(pl.program_id(2) == pl.num_programs(2) - 1)
    def _():
        o_ref[...] = acc_ref[...].astype(o_ref.dtype)


# --------------------------------------------------------------------------
# Tile selection helpers
# --------------------------------------------------------------------------
def _choose_tk(K, k_resident=2048):
    """Return (tk, K_pad).  Keep K resident when small; otherwise prefer a
    multiple-of-128 divisor of K so the weight never needs a padded HBM copy."""
    if K <= k_resident:
        return K, K
    if K % 128 == 0:
        for cand in range(min(k_resident, K), 255, -128):
            if K % cand == 0:
                return cand, K
    tk = k_resident
    return tk, _round_up(K, tk)


def _choose_tn(N):
    """Lane-dense output tiles (multiple of 128).  Single tile up to 1024."""
    n128 = _round_up(N, 128)
    if n128 <= 1024:
        return n128, n128
    for cand in range(512, 127, -128):
        if n128 % cand == 0:
            return cand, n128
    return 512, _round_up(n128, 512)


def _choose_tm(M, cap=512):
    """Multiples of 8 sublanes, capped; split evenly so padding stays small."""
    if M <= cap:
        tm = _round_up(max(M, 1), 8)
        return tm, tm
    n_tiles = -(-M // cap)               # cdiv
    tm = _round_up(-(-M // n_tiles), 8)  # cdiv, rounded to sublanes
    return tm, _round_up(M, tm)


# --------------------------------------------------------------------------
# Forward wrapper
# --------------------------------------------------------------------------
def ridge_forward(x, weight, bias, *, tm=None, tn=None, tk=None):
    """y = x @ weight.T + bias  (nn.Linear forward) as a Pallas TPU kernel.

    x:      (M, K)
    weight: (N, K)   (PyTorch nn.Linear convention)
    bias:   (N,)
    """
    M, K = x.shape
    N, K2 = weight.shape
    assert K == K2 and bias.shape == (N,)
    out_dtype = x.dtype

    # ----- tile selection ---------------------------------------------------
    if tn is None:
        tn, N_pad = _choose_tn(N)
    else:
        N_pad = _round_up(_round_up(N, 128), tn)
    if tm is None:
        tm, M_pad = _choose_tm(M)
    else:
        M_pad = _round_up(M, tm)
    if tk is None:
        tk, K_pad = _choose_tk(K)
    else:
        K_pad = _round_up(K, tk)

    # ----- operand preparation (one-time, fused by XLA) ---------------------
    # Pre-transpose weight to (K, N): standard (((1,),(0,))) contraction in the
    # kernel, no per-K-step transpose of the weight tile.
    wt = weight.T
    if (K_pad, N_pad) != (K, N):
        wt = jnp.pad(wt, ((0, K_pad - K), (0, N_pad - N)))
    xp = x
    if (M_pad, K_pad) != (M, K):
        xp = jnp.pad(x, ((0, M_pad - M), (0, K_pad - K)))
    bp = bias.reshape(1, N)
    if N_pad != N:
        bp = jnp.pad(bp, ((0, 0), (0, N_pad - N)))
    # TODO(synk): optional bf16 fast path (cast x/weight to bf16, keep f32
    # accumulation) would halve HBM traffic if the consumer tolerates it.

    n_j = N_pad // tn
    n_i = M_pad // tm
    n_k = K_pad // tk
    # N outermost: on v7x megacore the two TensorCores get disjoint weight
    # halves; on single-core v5e/v6e the grid is a serial loop so order is free.
    grid = (n_j, n_i, n_k)

    out_itemsize = jnp.dtype(out_dtype).itemsize
    use_acc = out_dtype != jnp.float32
    kernel = _ridge_kernel_acc if use_acc else _ridge_kernel_f32
    scratch = [pltpu.VMEM((tm, tn), jnp.float32)] if use_acc else []

    # VMEM budget: double-buffered x / w / bias / out tiles (+ acc scratch),
    # with headroom, capped at 48 MiB (safe on v7x's 64 MiB physical VMEM).
    in_itemsize = jnp.dtype(x.dtype).itemsize
    footprint = (2 * (tm * tk + tk * tn + tn) * in_itemsize
                 + 2 * tm * tn * out_itemsize)
    if use_acc:
        footprint += tm * tn * 4
    vmem_limit = int(min(48 * 1024 * 1024,
                         max(32 * 1024 * 1024, footprint * 3 // 2)))

    # Real streamed traffic: x is re-read once per N tile, weight once per
    # M tile, output written once.
    bytes_accessed = (
        xp.size * xp.dtype.itemsize * n_j
        + wt.size * wt.dtype.itemsize * n_i
        + bp.size * bp.dtype.itemsize * (n_i * n_j)
        + M_pad * N_pad * out_itemsize
    )

    y_pad = pl.pallas_call(
        kernel,
        out_shape=jax.ShapeDtypeStruct((M_pad, N_pad), out_dtype),
        grid_spec=pltpu.PrefetchScalarGridSpec(
            num_scalar_prefetch=0,
            grid=grid,
            in_specs=[
                pl.BlockSpec((tm, tk), lambda j, i, k: (i, k)),   # x tile
                pl.BlockSpec((tk, tn), lambda j, i, k: (k, j)),   # weight^T tile
                pl.BlockSpec((1, tn), lambda j, i, k: (0, j)),    # bias tile
            ],
            out_specs=pl.BlockSpec((tm, tn), lambda j, i, k: (i, j)),
            scratch_shapes=scratch,
        ),
        compiler_params=pltpu.CompilerParams(
            dimension_semantics=("parallel", "parallel", "arbitrary"),
            vmem_limit_bytes=vmem_limit,
        ),
        cost_estimate=pl.CostEstimate(
            flops=2 * M_pad * K_pad * N_pad,
            transcendentals=0,
            bytes_accessed=int(bytes_accessed),
        ),
    )(xp, wt, bp)

    if (M_pad, N_pad) != (M, N):
        return y_pad[:M, :N]
    return y_pad


# TODO(synk): the `fit` method (ridge solve via pinv) is training-time setup,
# not part of forward; it is not implemented as a kernel.


if __name__ == "__main__":
    key = jax.random.PRNGKey(0)

    def make_case(k, M, K, N):
        kx, kw, kb = jax.random.split(k, 3)
        bound = 1.0 / (K ** 0.5)  # nn.Linear-style init
        x = jax.random.normal(kx, (M, K), dtype=jnp.float32)
        w = jax.random.uniform(kw, (N, K), minval=-bound, maxval=bound,
                               dtype=jnp.float32)
        b = jax.random.uniform(kb, (N,), minval=-bound, maxval=bound,
                               dtype=jnp.float32)
        return x, w, b

    k0, k1, k2, k3 = jax.random.split(key, 4)
    cases = [
        make_case(k0, 8, 32, 16),      # module's natural small shape
        make_case(k1, 40, 96, 48),     # ragged M/N -> sublane/lane padding
        make_case(k2, 16, 1300, 20),   # ragged K, still fully resident (no pad)
        make_case(k3, 24, 2304, 16),   # K > 2048 -> tiled reduction (tk=1152), no pad
    ]

    for x, w, b in cases:
        y = jax.block_until_ready(ridge_forward(x, w, b))
        y_ref = x @ w.T + b
        assert y.shape == y_ref.shape
        assert jnp.allclose(y, y_ref, atol=1e-4, rtol=1e-4), (
            f"mismatch for shapes {x.shape}, {w.shape}")

    print("KERNEL_OK")
</pallas_src>

<mosaic_0001>
module attributes {stable_mosaic.version = 11 : i64} {
  func.func @_ridge_kernel_f32(%arg0: i32, %arg1: i32, %arg2: i32, %arg3: memref<8x32xf32, #tpu.memory_space<vmem>>, %arg4: memref<32x128xf32, #tpu.memory_space<vmem>>, %arg5: memref<1x128xf32, #tpu.memory_space<vmem>>, %arg6: memref<8x128xf32, #tpu.memory_space<vmem>>) attributes {dimension_semantics = [#tpu.dimension_semantics<parallel>, #tpu.dimension_semantics<parallel>, #tpu.dimension_semantics<arbitrary>], iteration_bounds = array<i64: 1, 1, 1>, scalar_prefetch = 0 : i64, scratch_operands = 0 : i64, tpu.core_type = #tpu.core_type<tc>, window_params = [{transform_indices = @transform_0, window_bounds = array<i64: 8, 32>}, {transform_indices = @transform_1, window_bounds = array<i64: 32, 128>}, {transform_indices = @transform_2, window_bounds = array<i64: 1, 128>}, {transform_indices = @transform_3, window_bounds = array<i64: 8, 128>}]} {
    %c0_i32 = arith.constant 0 : i32
    %0 = arith.cmpi eq, %arg2, %c0_i32 : i32
    %1 = arith.extui %0 : i1 to i32
    %c0_i32_0 = arith.constant 0 : i32
    %2 = arith.cmpi ne, %1, %c0_i32_0 : i32
    scf.if %2 {
      %c0_8 = arith.constant 0 : index
      %c0_9 = arith.constant 0 : index
      %9 = vector.load %arg5[%c0_8, %c0_9] : memref<1x128xf32, #tpu.memory_space<vmem>>, vector<1x128xf32>
      %10 = vector.shape_cast %9 : vector<1x128xf32> to vector<1x128xf32>
      %11 = vector.broadcast %10 : vector<1x128xf32> to vector<8x128xf32>
      %c0_10 = arith.constant 0 : index
      %c0_11 = arith.constant 0 : index
      %12 = vector.load %arg6[%c0_10, %c0_11] : memref<8x128xf32, #tpu.memory_space<vmem>>, vector<8x128xf32>
      tpu.vector_store %arg6[%c0_10, %c0_11], %11 {strides = array<i32>} : memref<8x128xf32, #tpu.memory_space<vmem>>, vector<8x128xf32>,
    } else {
    }
    %c0 = arith.constant 0 : index
    %c0_1 = arith.constant 0 : index
    %3 = vector.load %arg6[%c0, %c0_1] : memref<8x128xf32, #tpu.memory_space<vmem>>, vector<8x128xf32>
    %c0_2 = arith.constant 0 : index
    %c0_3 = arith.constant 0 : index
    %4 = vector.load %arg3[%c0_2, %c0_3] : memref<8x32xf32, #tpu.memory_space<vmem>>, vector<8x32xf32>
    %c0_4 = arith.constant 0 : index
    %c0_5 = arith.constant 0 : index
    %5 = vector.load %arg4[%c0_4, %c0_5] : memref<32x128xf32, #tpu.memory_space<vmem>>, vector<32x128xf32>
    %cst = arith.constant dense<0.000000e+00> : vector<8x128xf32>
    %6 = tpu.matmul %4, %5, %cst {dimension_numbers = #tpu.dot_dimension_numbers<[1], [0], [0], [1], [0, 0, 1, 1], [], []>} : vector<8x32xf32>, vector<32x128xf32>, vector<8x128xf32> -> vector<8x128xf32>
    %7 = arith.addf %3, %6 : vector<8x128xf32>
    %c0_6 = arith.constant 0 : index
    %c0_7 = arith.constant 0 : index
    %8 = vector.load %arg6[%c0_6, %c0_7] : memref<8x128xf32, #tpu.memory_space<vmem>>, vector<8x128xf32>
    tpu.vector_store %arg6[%c0_6, %c0_7], %7 {strides = array<i32>} : memref<8x128xf32, #tpu.memory_space<vmem>>, vector<8x128xf32>,
    return
  }
  func.func @transform_0(%arg0: i32, %arg1: i32, %arg2: i32) -> (i32, i32) {
    %c0_i32 = arith.constant 0 : i32
    return %arg1, %arg2 : i32, i32
  }
  func.func @transform_1(%arg0: i32, %arg1: i32, %arg2: i32) -> (i32, i32) {
    %c0_i32 = arith.constant 0 : i32
    return %arg2, %arg0 : i32, i32
  }
  func.func @transform_2(%arg0: i32, %arg1: i32, %arg2: i32) -> (i32, i32) {
    %c0_i32 = arith.constant 0 : i32
    %c0_i32_0 = arith.constant 0 : i32
    return %c0_i32, %arg0 : i32, i32
  }
  func.func @transform_3(%arg0: i32, %arg1: i32, %arg2: i32) -> (i32, i32) {
    %c0_i32 = arith.constant 0 : i32
    return %arg1, %arg0 : i32, i32
  }
}

</mosaic_0001>

<llo_original>
// kernel: tpu_custom_call.1
$region0: #{tpu_custom_call.1}
  #allocation0 [shape = 'u32[]', space=smem, size = 0x4, offset = 0x4, fixed_abs, tag = 'smem constant byte address 0x4 - core index']
  #allocation1 [shape = 'u32[72,128]{1,0:T(1,128)}', space=vmem, size = 0x9000, scoped, tag = 'internal scratch']
  %s0 = inlined_call_operand.hbm [shape: f32[8,32], index: 0, kind: input, shape index: {}]
  %s1 = inlined_call_operand.hbm [shape: f32[32,128], index: 1, kind: input, shape index: {}]
  %s2 = inlined_call_operand.vmem [shape: f32[1,128], index: 2, kind: input, shape index: {}]
  %s3 = inlined_call_operand.hbm [shape: f32[8,128], index: 3, kind: output, shape index: {}]
  %s4 = sld [smem:[#allocation0]]
  $region34: #{tpu_custom_call.1} parent=0
    _
  %s6 = ssub.s32 1, %s4
  %s7 = scalar_select 0, %s6, %s4
  $region1: #{tpu_custom_call.1} parent=0
    #allocation2 [shape = 'u8[4096]{0}', space=vmem, size = 0x1000, scoped, tag = 'input window, operand 0, single buffered']
    #allocation3 [shape = 's32[1]{0}', space=sflag, size = 0x4, scoped, tag = 'scoped memory for tpu_custom_call.1']
    #allocation4 [shape = 's32[1]{0}', space=sflag, size = 0x4, scoped, tag = 'scoped memory for tpu_custom_call.1']
    #allocation5 [shape = 'u8[16384]{0}', space=vmem, size = 0x4000, scoped, tag = 'input window, operand 1, single buffered']
    #allocation6 [shape = 's32[1]{0}', space=sflag, size = 0x4, scoped, tag = 'scoped memory for tpu_custom_call.1']
    #allocation7 [shape = 'u8[4096]{0}', space=vmem, size = 0x1000, scoped, tag = 'output window, operand 0, single buffered']
    %8 = vsyncpa [#allocation3], 0
    %9 = vsyncpa [#allocation6], 0
    %10 = vsyncpa [#allocation4], 0
    // Predicated region
    $region2: #{tpu_custom_call.1} parent=1 // pred_check
      _
    $region3: #{tpu_custom_call.1} parent=1 // pred_check_branch
      %12 = sbr.rel (0) target = $region5
    $region4: #{tpu_custom_call.1} parent=1 // pred_region
      %14 = vsyncadd [#allocation3], 0
      %s16 = sshll.u32 %s0, 4
      %s17 = int_to_ptr.hbm [resolvable:$true] %s16
      %s18 = sshll.u32 [#allocation2], 4
      %s19 = int_to_ptr.vmem [resolvable:$true] %s18
      %21 = dma.hbm_to_vmem [thread:$0]  %s17, 128, %s19, [#allocation3]
    $region5: #{tpu_custom_call.1} parent=1 // pred_fallthru
      _
    // Predicated region
    $region6: #{tpu_custom_call.1} parent=1 // pred_check
      _
    $region7: #{tpu_custom_call.1} parent=1 // pred_check_branch
      %23 = sbr.rel (0) target = $region9
    $region8: #{tpu_custom_call.1} parent=1 // pred_region
      %25 = vsyncadd [#allocation6], 0
      %s26 = sshll.u32 %s1, 4
      %s27 = int_to_ptr.hbm [resolvable:$true] %s26
      %s28 = sshll.u32 [#allocation5], 4
      %s29 = int_to_ptr.vmem [resolvable:$true] %s28
      %34 = dma.hbm_to_vmem [thread:$0]  %s27, 512, %s29, [#allocation6], 128, 128, 8
    $region9: #{tpu_custom_call.1} parent=1 // pred_fallthru
      _
    // Predicated region
    $region10: #{tpu_custom_call.1} parent=1 // pred_check
      _
    $region11: #{tpu_custom_call.1} parent=1 // pred_check_branch
      %36 = sbr.rel (0) target = $region13
    $region12: #{tpu_custom_call.1} parent=1 // pred_region
      _
    $region13: #{tpu_custom_call.1} parent=1 // pred_fallthru
      _
    // Predicated region
    $region14: #{tpu_custom_call.1} parent=1 // pred_check
      _
    $region15: #{tpu_custom_call.1} parent=1 // pred_check_branch
      %38 = sbr.rel (0) target = $region17
    $region16: #{tpu_custom_call.1} parent=1 // pred_region
      %40 = dma.done [#allocation3], 128
    $region17: #{tpu_custom_call.1} parent=1 // pred_fallthru
      _
    // Predicated region
    $region18: #{tpu_custom_call.1} parent=1 // pred_check
      _
    $region19: #{tpu_custom_call.1} parent=1 // pred_check_branch
      %42 = sbr.rel (0) target = $region21
    $region20: #{tpu_custom_call.1} parent=1 // pred_region
      %44 = dma.done [#allocation6], 512
    $region21: #{tpu_custom_call.1} parent=1 // pred_fallthru
      _
    %p45 = scmp.eq.s32.totalorder 0, 0
    // Predicated region
    $region22: #{tpu_custom_call.1} parent=1 // pred_check
      %p46 = pneg %p45
    $region23: #{tpu_custom_call.1} parent=1 // pred_check_branch
      %48 = sbr.rel (%p46) target = $region25
    $region24: #{tpu_custom_call.1} parent=1 // pred_region
      %v49 = vld [vmem:[%s2] sm:$0x1]
      %v51 = vperm.slane %v49, 0
      %53 = vst [vmem:[#allocation7] sm:$0xff] %v51
    $region25: #{tpu_custom_call.1} parent=1 // pred_fallthru
      _
    %v54 = vld [vmem:[#allocation7] sm:$0xff]
    %v55 = vld [vmem:[#allocation2] sm:$0xff]
    %v56 = vld [vmem:[#allocation5] sm:$0xff]
    %v57 = vld [vmem:[#allocation5 + $0x8] sm:$0xff]
    %v58 = vld [vmem:[#allocation5 + $0x10] sm:$0xff]
    %v59 = vld [vmem:[#allocation5 + $0x18] sm:$0xff]
    %vm60 = vcmask 261120
    %v62 = vsel %vm60, %v55, 0
    %64 = vmatpush.msra.mxu0 0.0
    %65 = vmatpush.msra.mxu0 0.0
    %66 = vmatpush.msra.mxu0 0.0
    %67 = vmatpush.msra.mxu0 0.0
    %68 = vmatpush.msra.mxu0 0.0
    %69 = vmatpush.msra.mxu0 0.0
    %70 = vmatpush.msra.mxu0 0.0
    %71 = vmatpush.msra.mxu0 0.0
    %72 = vmatpush.msra.mxu0 0.0
    %73 = vmatpush.msra.mxu0 0.0
    %74 = vmatpush.msra.mxu0 0.0
    %75 = vmatpush.msra.mxu0 0.0
    %76 = vmatpush.msra.mxu0 %v59
    %77 = vmatpush.msra.mxu0 %v58
    %78 = vmatpush.msra.mxu0 %v57
    %79 = vmatpush.msra.mxu0 %v56
    %80 = vmatmul.f32.gmra.mxu0 %v62
    %v81 = vpop.f32.mrf.mxu0
    %v82 = vadd.f32 0.0, %v81
    %83 = vdwg.mxu0
    %v84 = vadd.f32 %v54, %v82
    %85 = vst [vmem:[#allocation7] sm:$0xff] %v84
    // Predicated region
    $region26: #{tpu_custom_call.1} parent=1 // pred_check
      _
    $region27: #{tpu_custom_call.1} parent=1 // pred_check_branch
      %87 = sbr.rel (0) target = $region29
    $region28: #{tpu_custom_call.1} parent=1 // pred_region
      %89 = vsyncadd [#allocation4], 0
      %s91 = sshll.u32 [#allocation7], 4
      %s92 = int_to_ptr.vmem [resolvable:$true] %s91
      %s93 = sshll.u32 %s3, 4
      %s94 = int_to_ptr.hbm [resolvable:$true] %s93
      %96 = dma.vmem_to_hbm [thread:$0]  %s92, 128, %s94, [#allocation4]
    $region29: #{tpu_custom_call.1} parent=1 // pred_fallthru
      _
    // Predicated region
    $region30: #{tpu_custom_call.1} parent=1 // pred_check
      _
    $region31: #{tpu_custom_call.1} parent=1 // pred_check_branch
      %98 = sbr.rel (0) target = $region33
    $region32: #{tpu_custom_call.1} parent=1 // pred_region
      %100 = dma.done [#allocation4], 128
    $region33: #{tpu_custom_call.1} parent=1 // pred_fallthru
      _
    %101 = vsyncpa [#allocation3], 1
    %102 = vsyncpa [#allocation6], 1
    %103 = vsyncpa [#allocation4], 1

</llo_original>
